<compile_context>
chip_gen: v6e
topology: v6e:2x2x1
jax: 0.10.0
libtpu: 0.0.40
codegen_flags: <defaults>
</compile_context>

<pallas_src>
import jax
import jax.numpy as jnp
from jax.experimental import pallas as pl
from jax.experimental.pallas import tpu as pltpu

HEAD_PAD = 128   # lane-dense fused-head output width (1 + n_classes, padded to 128)
TB_MAX = 1024    # max batch-tile rows per grid step


def _mish(x):
    # Mish(x) = x * tanh(softplus(x)) = x - 2x / ((1 + exp(x))^2 + 1)
    # Single EUP transcendental (exp) + approx reciprocal (also EUP, cheap).
    # Clamp the exp argument so (1+e^x)^2 cannot overflow f32; for x > 30 the
    # correction term is ~0 anyway, so Mish(x) ~= x (exact in this form).
    e = jnp.exp(jnp.minimum(x, 30.0))
    t = 1.0 + e
    denom = t * t + 1.0
    return x - 2.0 * x * pl.reciprocal(denom, approx=True)


def _disc_kernel(x_ref, w1_ref, b1_ref, w2_ref, b2_ref, wh_ref, out_ref):
    # Layer 1: Linear(data_size -> 512) + Mish.  bf16 MXU inputs, f32 accumulate.
    x = x_ref[...]
    h1 = jnp.dot(x.astype(jnp.bfloat16), w1_ref[...],
                 preferred_element_type=jnp.float32) + b1_ref[...]
    h1 = _mish(h1)

    # Layer 2: Linear(512 -> 512) + Mish.
    h2 = jnp.dot(h1.astype(jnp.bfloat16), w2_ref[...],
                 preferred_element_type=jnp.float32) + b2_ref[...]
    h2 = _mish(h2)

    # Fused heads (both bias=False in the reference): one lane-dense (TB, 128)
    # matmul; columns [0] = validity, [1:1+n_classes] = classify, rest zero pad.
    heads = jnp.dot(h2.astype(jnp.bfloat16), wh_ref[...],
                    preferred_element_type=jnp.float32)
    out_ref[...] = heads.astype(out_ref.dtype)


def prepare_params(params):
    """One-time parameter packing (call once per weight update, not per forward).

    Input `params` holds f32 weights pre-transposed to [in, out].  Returns bf16
    matmul weights, f32 (1, hidden) biases, and the fused/padded head matrix.
    """
    hidden = params["w1"].shape[1]
    n_classes = params["wcls"].shape[1]
    n_heads = 1 + n_classes
    assert n_heads <= HEAD_PAD

    wheads = jnp.concatenate([params["wadv"], params["wcls"]], axis=1)  # [hidden, 11]
    wheads = jnp.pad(wheads, ((0, 0), (0, HEAD_PAD - n_heads)))

    return {
        "w1": params["w1"].astype(jnp.bfloat16),
        "b1": params["b1"].reshape(1, hidden).astype(jnp.float32),
        "w2": params["w2"].astype(jnp.bfloat16),
        "b2": params["b2"].reshape(1, hidden).astype(jnp.float32),
        "wheads": wheads.astype(jnp.bfloat16),
        "n_classes": int(n_classes),   # static
    }


def _choose_batch_tile(B):
    """Pick the batch tile: big tiles to amortize per-step overhead, but >= 2 grid
    steps when B >= 16 so the parallel axis can shard across v7x's 2 TensorCores."""
    b8 = ((B + 7) // 8) * 8
    if b8 <= 16:
        return b8
    half = (((B + 1) // 2) + 7) // 8 * 8
    return min(TB_MAX, half)


def discriminator_forward(x, prepped):
    """x: [B, data_size] float32.  prepped: output of prepare_params()."""
    B, data_size = x.shape
    hidden = prepped["w1"].shape[1]
    n_classes = prepped["n_classes"]
    n_heads = 1 + n_classes

    TB = _choose_batch_tile(B)
    num_tiles = pl.cdiv(B, TB)
    B_pad = num_tiles * TB
    x_p = x if B_pad == B else jnp.pad(x, ((0, B_pad - B), (0, 0)))

    heads = pl.pallas_call(
        _disc_kernel,
        out_shape=jax.ShapeDtypeStruct((B_pad, HEAD_PAD), jnp.bfloat16),
        grid=(num_tiles,),
        in_specs=[
            pl.BlockSpec((TB, data_size), lambda i: (i, 0)),      # x tile (pipelined)
            pl.BlockSpec((data_size, hidden), lambda i: (0, 0)),  # w1 (VMEM-resident)
            pl.BlockSpec((1, hidden), lambda i: (0, 0)),          # b1
            pl.BlockSpec((hidden, hidden), lambda i: (0, 0)),     # w2 (VMEM-resident)
            pl.BlockSpec((1, hidden), lambda i: (0, 0)),          # b2
            pl.BlockSpec((hidden, HEAD_PAD), lambda i: (0, 0)),   # fused heads
        ],
        out_specs=pl.BlockSpec((TB, HEAD_PAD), lambda i: (i, 0)),
        compiler_params=pltpu.CompilerParams(
            dimension_semantics=("parallel",),
            vmem_limit_bytes=(32 * 1024 * 1024) if TB >= 512 else None,
        ),
    )(x_p, prepped["w1"], prepped["b1"], prepped["w2"], prepped["b2"],
      prepped["wheads"])

    validity = heads[:B, :1].astype(jnp.float32)
    classify = heads[:B, 1:n_heads].astype(jnp.float32)
    return validity, classify


def init_params(key, data_size, hidden, n_classes):
    """Deterministic PyTorch-style uniform(-1/sqrt(fan_in), 1/sqrt(fan_in)) init.

    Weights are stored already transposed to [in, out] for the kernel.  adv/cls
    heads have no biases (bias=False in the reference module).
    """
    ks = jax.random.split(key, 6)

    def u(k, shape, fan_in):
        bound = 1.0 / jnp.sqrt(fan_in)
        return jax.random.uniform(k, shape, jnp.float32, -bound, bound)

    return {
        "w1": u(ks[0], (data_size, hidden), data_size),
        "b1": u(ks[1], (hidden,), data_size),
        "w2": u(ks[2], (hidden, hidden), hidden),
        "b2": u(ks[3], (hidden,), hidden),
        "wadv": u(ks[4], (hidden, 1), hidden),
        "wcls": u(ks[5], (hidden, n_classes), hidden),
    }


def _reference_forward(x, params):
    """Pure-JAX f32 reference of the PyTorch Discriminator forward."""
    def mish(v):
        return v * jnp.tanh(jax.nn.softplus(v))
    h = mish(x @ params["w1"] + params["b1"])
    h = mish(h @ params["w2"] + params["b2"])
    return h @ params["wadv"], h @ params["wcls"]


if __name__ == "__main__":
    DATA_SIZE = 32
    HIDDEN = 512
    N_CLASSES = 10
    BATCH = 8

    key = jax.random.PRNGKey(0)
    k_x, k_p = jax.random.split(key)

    x = jax.random.normal(k_x, (BATCH, DATA_SIZE), jnp.float32)
    params = init_params(k_p, DATA_SIZE, HIDDEN, N_CLASSES)

    prepped = prepare_params(params)              # one-time packing (hoisted)
    validity, classify = discriminator_forward(x, prepped)
    jax.block_until_ready((validity, classify))

    assert validity.shape == (BATCH, 1)
    assert classify.shape == (BATCH, N_CLASSES)

    # Tolerance check vs. f32 reference (bf16 weights/output + approx reciprocal).
    v_ref, c_ref = _reference_forward(x, params)
    assert bool(jnp.allclose(validity, v_ref, atol=1e-1, rtol=1e-1))
    assert bool(jnp.allclose(classify, c_ref, atol=1e-1, rtol=1e-1))

    print("KERNEL_OK")
</pallas_src>

<mosaic_0001>
module attributes {stable_mosaic.version = 11 : i64} {
  func.func @_disc_kernel(%arg0: i32, %arg1: memref<8x32xf32, #tpu.memory_space<vmem>>, %arg2: memref<32x512xbf16, #tpu.memory_space<vmem>>, %arg3: memref<1x512xf32, #tpu.memory_space<vmem>>, %arg4: memref<512x512xbf16, #tpu.memory_space<vmem>>, %arg5: memref<1x512xf32, #tpu.memory_space<vmem>>, %arg6: memref<512x128xbf16, #tpu.memory_space<vmem>>, %arg7: memref<8x128xbf16, #tpu.memory_space<vmem>>) attributes {dimension_semantics = [#tpu.dimension_semantics<parallel>], iteration_bounds = array<i64: 1>, scalar_prefetch = 0 : i64, scratch_operands = 0 : i64, tpu.core_type = #tpu.core_type<tc>, window_params = [{transform_indices = @transform_0, window_bounds = array<i64: 8, 32>}, {pipeline_mode = #tpu.pipeline_mode<synchronous>, transform_indices = @transform_1, window_bounds = array<i64: 32, 512>}, {pipeline_mode = #tpu.pipeline_mode<synchronous>, transform_indices = @transform_2, window_bounds = array<i64: 1, 512>}, {pipeline_mode = #tpu.pipeline_mode<synchronous>, transform_indices = @transform_3, window_bounds = array<i64: 512, 512>}, {pipeline_mode = #tpu.pipeline_mode<synchronous>, transform_indices = @transform_4, window_bounds = array<i64: 1, 512>}, {pipeline_mode = #tpu.pipeline_mode<synchronous>, transform_indices = @transform_5, window_bounds = array<i64: 512, 128>}, {transform_indices = @transform_6, window_bounds = array<i64: 8, 128>}]} {
    %c0 = arith.constant 0 : index
    %c0_0 = arith.constant 0 : index
    %0 = vector.load %arg1[%c0, %c0_0] : memref<8x32xf32, #tpu.memory_space<vmem>>, vector<8x32xf32>
    %1 = arith.truncf %0 : vector<8x32xf32> to vector<8x32xbf16>
    %c0_1 = arith.constant 0 : index
    %c0_2 = arith.constant 0 : index
    %2 = vector.load %arg2[%c0_1, %c0_2] : memref<32x512xbf16, #tpu.memory_space<vmem>>, vector<32x512xbf16>
    %cst = arith.constant dense<0.000000e+00> : vector<8x512xf32>
    %3 = tpu.matmul %1, %2, %cst {dimension_numbers = #tpu.dot_dimension_numbers<[1], [0], [0], [1], [0, 0, 1, 1], [], []>} : vector<8x32xbf16>, vector<32x512xbf16>, vector<8x512xf32> -> vector<8x512xf32>
    %c0_3 = arith.constant 0 : index
    %c0_4 = arith.constant 0 : index
    %4 = vector.load %arg3[%c0_3, %c0_4] : memref<1x512xf32, #tpu.memory_space<vmem>>, vector<1x512xf32>
    %5 = vector.broadcast %4 : vector<1x512xf32> to vector<8x512xf32>
    %6 = arith.addf %3, %5 : vector<8x512xf32>
    %cst_5 = arith.constant 3.000000e+01 : f32
    %7 = vector.broadcast %cst_5 : f32 to vector<8x512xf32>
    %8 = arith.minimumf %6, %7 : vector<8x512xf32>
    %9 = math.exp %8 : vector<8x512xf32>
    %cst_6 = arith.constant 1.000000e+00 : f32
    %10 = vector.broadcast %cst_6 : f32 to vector<8x512xf32>
    %11 = arith.addf %10, %9 : vector<8x512xf32>
    %12 = arith.mulf %11, %11 : vector<8x512xf32>
    %cst_7 = arith.constant 1.000000e+00 : f32
    %13 = vector.broadcast %cst_7 : f32 to vector<8x512xf32>
    %14 = arith.addf %12, %13 : vector<8x512xf32>
    %cst_8 = arith.constant 2.000000e+00 : f32
    %15 = vector.broadcast %cst_8 : f32 to vector<8x512xf32>
    %16 = arith.mulf %15, %6 : vector<8x512xf32>
    %17 = tpu.reciprocal %14 {approx = true} : vector<8x512xf32> -> vector<8x512xf32>
    %18 = arith.mulf %16, %17 : vector<8x512xf32>
    %19 = arith.subf %6, %18 : vector<8x512xf32>
    %20 = arith.truncf %19 : vector<8x512xf32> to vector<8x512xbf16>
    %c0_9 = arith.constant 0 : index
    %c0_10 = arith.constant 0 : index
    %21 = vector.load %arg4[%c0_9, %c0_10] : memref<512x512xbf16, #tpu.memory_space<vmem>>, vector<512x512xbf16>
    %cst_11 = arith.constant dense<0.000000e+00> : vector<8x512xf32>
    %22 = tpu.matmul %20, %21, %cst_11 {dimension_numbers = #tpu.dot_dimension_numbers<[1], [0], [0], [1], [0, 0, 1, 1], [], []>} : vector<8x512xbf16>, vector<512x512xbf16>, vector<8x512xf32> -> vector<8x512xf32>
    %c0_12 = arith.constant 0 : index
    %c0_13 = arith.constant 0 : index
    %23 = vector.load %arg5[%c0_12, %c0_13] : memref<1x512xf32, #tpu.memory_space<vmem>>, vector<1x512xf32>
    %24 = vector.broadcast %23 : vector<1x512xf32> to vector<8x512xf32>
    %25 = arith.addf %22, %24 : vector<8x512xf32>
    %cst_14 = arith.constant 3.000000e+01 : f32
    %26 = vector.broadcast %cst_14 : f32 to vector<8x512xf32>
    %27 = arith.minimumf %25, %26 : vector<8x512xf32>
    %28 = math.exp %27 : vector<8x512xf32>
    %cst_15 = arith.constant 1.000000e+00 : f32
    %29 = vector.broadcast %cst_15 : f32 to vector<8x512xf32>
    %30 = arith.addf %29, %28 : vector<8x512xf32>
    %31 = arith.mulf %30, %30 : vector<8x512xf32>
    %cst_16 = arith.constant 1.000000e+00 : f32
    %32 = vector.broadcast %cst_16 : f32 to vector<8x512xf32>
    %33 = arith.addf %31, %32 : vector<8x512xf32>
    %cst_17 = arith.constant 2.000000e+00 : f32
    %34 = vector.broadcast %cst_17 : f32 to vector<8x512xf32>
    %35 = arith.mulf %34, %25 : vector<8x512xf32>
    %36 = tpu.reciprocal %33 {approx = true} : vector<8x512xf32> -> vector<8x512xf32>
    %37 = arith.mulf %35, %36 : vector<8x512xf32>
    %38 = arith.subf %25, %37 : vector<8x512xf32>
    %39 = arith.truncf %38 : vector<8x512xf32> to vector<8x512xbf16>
    %c0_18 = arith.constant 0 : index
    %c0_19 = arith.constant 0 : index
    %40 = vector.load %arg6[%c0_18, %c0_19] : memref<512x128xbf16, #tpu.memory_space<vmem>>, vector<512x128xbf16>
    %cst_20 = arith.constant dense<0.000000e+00> : vector<8x128xf32>
    %41 = tpu.matmul %39, %40, %cst_20 {dimension_numbers = #tpu.dot_dimension_numbers<[1], [0], [0], [1], [0, 0, 1, 1], [], []>} : vector<8x512xbf16>, vector<512x128xbf16>, vector<8x128xf32> -> vector<8x128xf32>
    %42 = arith.truncf %41 : vector<8x128xf32> to vector<8x128xbf16>
    %c0_21 = arith.constant 0 : index
    %c0_22 = arith.constant 0 : index
    %43 = vector.load %arg7[%c0_21, %c0_22] : memref<8x128xbf16, #tpu.memory_space<vmem>>, vector<8x128xbf16>
    tpu.vector_store %arg7[%c0_21, %c0_22], %42 {strides = array<i32>} : memref<8x128xbf16, #tpu.memory_space<vmem>>, vector<8x128xbf16>,
    return
  }
  func.func @transform_0(%arg0: i32) -> (i32, i32) {
    %c0_i32 = arith.constant 0 : i32
    %c0_i32_0 = arith.constant 0 : i32
    return %arg0, %c0_i32 : i32, i32
  }
  func.func @transform_1(%arg0: i32) -> (i32, i32) {
    %c0_i32 = arith.constant 0 : i32
    %c0_i32_0 = arith.constant 0 : i32
    %c0_i32_1 = arith.constant 0 : i32
    return %c0_i32, %c0_i32_0 : i32, i32
  }
  func.func @transform_2(%arg0: i32) -> (i32, i32) {
    %c0_i32 = arith.constant 0 : i32
    %c0_i32_0 = arith.constant 0 : i32
    %c0_i32_1 = arith.constant 0 : i32
    return %c0_i32, %c0_i32_0 : i32, i32
  }
  func.func @transform_3(%arg0: i32) -> (i32, i32) {
    %c0_i32 = arith.constant 0 : i32
    %c0_i32_0 = arith.constant 0 : i32
    %c0_i32_1 = arith.constant 0 : i32
    return %c0_i32, %c0_i32_0 : i32, i32
  }
  func.func @transform_4(%arg0: i32) -> (i32, i32) {
    %c0_i32 = arith.constant 0 : i32
    %c0_i32_0 = arith.constant 0 : i32
    %c0_i32_1 = arith.constant 0 : i32
    return %c0_i32, %c0_i32_0 : i32, i32
  }
  func.func @transform_5(%arg0: i32) -> (i32, i32) {
    %c0_i32 = arith.constant 0 : i32
    %c0_i32_0 = arith.constant 0 : i32
    %c0_i32_1 = arith.constant 0 : i32
    return %c0_i32, %c0_i32_0 : i32, i32
  }
  func.func @transform_6(%arg0: i32) -> (i32, i32) {
    %c0_i32 = arith.constant 0 : i32
    %c0_i32_0 = arith.constant 0 : i32
    return %arg0, %c0_i32 : i32, i32
  }
}

</mosaic_0001>

<llo_original>
// kernel: tpu_custom_call.1
$region0: #{tpu_custom_call.1}
  #allocation0 [shape = 'u32[]', space=smem, size = 0x4, offset = 0x4, fixed_abs, tag = 'smem constant byte address 0x4 - core index']
  #allocation1 [shape = 'u32[144,128]{1,0:T(1,128)}', space=vmem, size = 0x12000, scoped, tag = 'internal scratch']
  %s0 = inlined_call_operand.hbm [shape: f32[8,32], index: 0, kind: input, shape index: {}]
  %s1 = inlined_call_operand.hbm [shape: bf16[32,512], index: 1, kind: input, shape index: {}]
  %s2 = inlined_call_operand.hbm [shape: f32[1,512], index: 2, kind: input, shape index: {}]
  %s3 = inlined_call_operand.hbm [shape: bf16[512,512], index: 3, kind: input, shape index: {}]
  %s4 = inlined_call_operand.vmem [shape: f32[1,512], index: 4, kind: input, shape index: {}]
  %s5 = inlined_call_operand.hbm [shape: bf16[512,128], index: 5, kind: input, shape index: {}]
  %s6 = inlined_call_operand.hbm [shape: bf16[8,128], index: 6, kind: output, shape index: {}]
  %s7 = sld [smem:[#allocation0]]
  $region54: #{tpu_custom_call.1} parent=0
    _
  %s9 = ssub.s32 1, %s7
  %s10 = scalar_select 0, %s9, %s7
  $region1: #{tpu_custom_call.1} parent=0
    #allocation2 [shape = 'u8[4096]{0}', space=vmem, size = 0x1000, scoped, tag = 'input window, operand 0, single buffered']
    #allocation3 [shape = 's32[1]{0}', space=sflag, size = 0x4, scoped, tag = 'scoped memory for tpu_custom_call.1']
    #allocation4 [shape = 's32[1]{0}', space=sflag, size = 0x4, scoped, tag = 'scoped memory for tpu_custom_call.1']
    #allocation5 [shape = 'u8[32768]{0}', space=vmem, size = 0x8000, scoped, tag = 'input window, operand 1, single buffered']
    #allocation6 [shape = 's32[1]{0}', space=sflag, size = 0x4, scoped, tag = 'scoped memory for tpu_custom_call.1']
    #allocation7 [shape = 'u8[2048]{0}', space=vmem, size = 0x800, scoped, tag = 'input window, operand 2, single buffered']
    #allocation8 [shape = 'u8[524288]{0}', space=vmem, size = 0x80000, scoped, tag = 'input window, operand 3, single buffered']
    #allocation9 [shape = 's32[1]{0}', space=sflag, size = 0x4, scoped, tag = 'scoped memory for tpu_custom_call.1']
    #allocation10 [shape = 'u8[131072]{0}', space=vmem, size = 0x20000, scoped, tag = 'input window, operand 5, single buffered']
    #allocation11 [shape = 'u8[2048]{0}', space=vmem, size = 0x800, scoped, tag = 'output window, operand 0, single buffered']
    %11 = vsyncpa [#allocation3], 0
    %12 = vsyncpa [#allocation6], 0
    %13 = vsyncpa [#allocation9], 0
    %14 = vsyncpa [#allocation4], 0
    // Predicated region
    $region2: #{tpu_custom_call.1} parent=1 // pred_check
      _
    $region3: #{tpu_custom_call.1} parent=1 // pred_check_branch
      %16 = sbr.rel (0) target = $region5
    $region4: #{tpu_custom_call.1} parent=1 // pred_region
      %s18 = ssub.s32 128, 128
      %19 = vsyncadd [#allocation3], %s18
      %s21 = sshll.u32 [#allocation2], 4
      %s22 = int_to_ptr.vmem [resolvable:$true] %s21
      %24 = dma.hbm_to_vmem [thread:$0]  %s0, 128, %s22, [#allocation3]
    $region5: #{tpu_custom_call.1} parent=1 // pred_fallthru
      _
    // Predicated region
    $region6: #{tpu_custom_call.1} parent=1 // pred_check
      _
    $region7: #{tpu_custom_call.1} parent=1 // pred_check_branch
      %26 = sbr.rel (0) target = $region9
    $region8: #{tpu_custom_call.1} parent=1 // pred_region
      %s28 = ssub.s32 1024, 1024
      %29 = vsyncadd [#allocation6], %s28
      %s30 = sshll.u32 [#allocation5], 4
      %s31 = int_to_ptr.vmem [resolvable:$true] %s30
      %36 = dma.hbm_to_vmem [thread:$0]  %s1, 1024, %s31, [#allocation6], 256, 256, 16
    $region9: #{tpu_custom_call.1} parent=1 // pred_fallthru
      _
    // Predicated region
    $region10: #{tpu_custom_call.1} parent=1 // pred_check
      _
    $region11: #{tpu_custom_call.1} parent=1 // pred_check_branch
      %38 = sbr.rel (0) target = $region13
    $region12: #{tpu_custom_call.1} parent=1 // pred_region
      %s40 = ssub.s32 64, 64
      %41 = vsyncadd [#allocation6], %s40
      %s43 = sshll.u32 [#allocation7], 4
      %s44 = int_to_ptr.vmem [resolvable:$true] %s43
      %46 = dma.hbm_to_vmem [thread:$0]  %s2, 64, %s44, [#allocation6]
    $region13: #{tpu_custom_call.1} parent=1 // pred_fallthru
      _
    // Predicated region
    $region14: #{tpu_custom_call.1} parent=1 // pred_check
      _
    $region15: #{tpu_custom_call.1} parent=1 // pred_check_branch
      %48 = sbr.rel (0) target = $region17
    $region16: #{tpu_custom_call.1} parent=1 // pred_region
      %s50 = ssub.s32 16384, 16384
      %51 = vsyncadd [#allocation9], %s50
      %s52 = sshll.u32 [#allocation8], 4
      %s53 = int_to_ptr.vmem [resolvable:$true] %s52
      %58 = dma.hbm_to_vmem [thread:$0]  %s3, 16384, %s53, [#allocation9], 256, 256, 16
    $region17: #{tpu_custom_call.1} parent=1 // pred_fallthru
      _
    // Predicated region
    $region18: #{tpu_custom_call.1} parent=1 // pred_check
      _
    $region19: #{tpu_custom_call.1} parent=1 // pred_check_branch
      %60 = sbr.rel (0) target = $region21
    $region20: #{tpu_custom_call.1} parent=1 // pred_region
      _
    $region21: #{tpu_custom_call.1} parent=1 // pred_fallthru
      _
    // Predicated region
    $region22: #{tpu_custom_call.1} parent=1 // pred_check
      _
    $region23: #{tpu_custom_call.1} parent=1 // pred_check_branch
      %62 = sbr.rel (0) target = $region25
    $region24: #{tpu_custom_call.1} parent=1 // pred_region
      %s64 = ssub.s32 4096, 4096
      %65 = vsyncadd [#allocation9], %s64
      %s66 = sshll.u32 [#allocation10], 4
      %s67 = int_to_ptr.vmem [resolvable:$true] %s66
      %72 = dma.hbm_to_vmem [thread:$0]  %s5, 4096, %s67, [#allocation9], 64, 64, 4
    $region25: #{tpu_custom_call.1} parent=1 // pred_fallthru
      _
    // Predicated region
    $region26: #{tpu_custom_call.1} parent=1 // pred_check
      _
    $region27: #{tpu_custom_call.1} parent=1 // pred_check_branch
      %74 = sbr.rel (0) target = $region29
    $region28: #{tpu_custom_call.1} parent=1 // pred_region
      %75 = dma.done [#allocation3], 128
    $region29: #{tpu_custom_call.1} parent=1 // pred_fallthru
      _
    // Predicated region
    $region30: #{tpu_custom_call.1} parent=1 // pred_check
      _
    $region31: #{tpu_custom_call.1} parent=1 // pred_check_branch
      %77 = sbr.rel (0) target = $region33
    $region32: #{tpu_custom_call.1} parent=1 // pred_region
      %78 = dma.done [#allocation6], 1024
    $region33: #{tpu_custom_call.1} parent=1 // pred_fallthru
      _
    // Predicated region
    $region34: #{tpu_custom_call.1} parent=1 // pred_check
      _
    $region35: #{tpu_custom_call.1} parent=1 // pred_check_branch
      %80 = sbr.rel (0) target = $region37
    $region36: #{tpu_custom_call.1} parent=1 // pred_region
      %81 = dma.done [#allocation6], 64
    $region37: #{tpu_custom_call.1} parent=1 // pred_fallthru
      _
    // Predicated region
    $region38: #{tpu_custom_call.1} parent=1 // pred_check
      _
    $region39: #{tpu_custom_call.1} parent=1 // pred_check_branch
      %83 = sbr.rel (0) target = $region41
    $region40: #{tpu_custom_call.1} parent=1 // pred_region
      %84 = dma.done [#allocation9], 16384
    $region41: #{tpu_custom_call.1} parent=1 // pred_fallthru
      _
    // Predicated region
    $region42: #{tpu_custom_call.1} parent=1 // pred_check
      _
    $region43: #{tpu_custom_call.1} parent=1 // pred_check_branch
      %86 = sbr.rel (0) target = $region45
    $region44: #{tpu_custom_call.1} parent=1 // pred_region
      %87 = dma.done [#allocation9], 4096
    $region45: #{tpu_custom_call.1} parent=1 // pred_fallthru
      _
    %v89 = vld [vmem:[#allocation2] sm:$0xff]
    %v90 = vpack.c.bf16 %v89, %v89
    %v91 = vld [vmem:[#allocation5] sm:$0xff]
    %v92 = vld [vmem:[#allocation5 + $0x8] sm:$0xff]
    %v93 = vld [vmem:[#allocation5 + $0x10] sm:$0xff]
    %v94 = vld [vmem:[#allocation5 + $0x18] sm:$0xff]
    %v95 = vld [vmem:[#allocation5 + $0x20] sm:$0xff]
    %v96 = vld [vmem:[#allocation5 + $0x28] sm:$0xff]
    %v97 = vld [vmem:[#allocation5 + $0x30] sm:$0xff]
    %v98 = vld [vmem:[#allocation5 + $0x38] sm:$0xff]
    %v99 = vld [vmem:[#allocation7] sm:$0xf]
    %v101 = vlaneseq
    %v102 = vshrl.u32 %v101, 7
    %v103 = vsub.s32 0, %v102
    %v104 = vrot.slane %v99, %v103
    %v105 = vlaneseq
    %v106 = vshrl.u32 %v105, 7
    %v107 = vsub.s32 1, %v106
    %v108 = vrot.slane %v99, %v107
    %v109 = vlaneseq
    %v110 = vshrl.u32 %v109, 7
    %v111 = vsub.s32 2, %v110
    %v112 = vrot.slane %v99, %v111
    %v113 = vlaneseq
    %v114 = vshrl.u32 %v113, 7
    %v115 = vsub.s32 3, %v114
    %v116 = vrot.slane %v99, %v115
    %v129 = vunpack.c.l.b16 %v91
    %v130 = vunpack.c.h.b16 %v91
    %v131 = vunpack.c.l.b16 %v92
    %v132 = vunpack.c.h.b16 %v92
    %v133 = vunpack.c.l.b16 %v93
    %v134 = vunpack.c.h.b16 %v93
    %v135 = vunpack.c.l.b16 %v94
    %v136 = vunpack.c.h.b16 %v94
    %v137 = vunpack.c.l.b16 %v95
    %v138 = vunpack.c.h.b16 %v95
    %v139 = vunpack.c.l.b16 %v96
    %v140 = vunpack.c.h.b16 %v96
    %v141 = vunpack.c.l.b16 %v97
    %v142 = vunpack.c.h.b16 %v97
    %v143 = vunpack.c.l.b16 %v98
    %v144 = vunpack.c.h.b16 %v98
    %v145 = vpack.c.b16 %v133, %v129
    %v146 = vpack.c.b16 %v134, %v130
    %v147 = vpack.c.b16 %v135, %v131
    %v148 = vpack.c.b16 %v136, %v132
    %v149 = vpack.c.b16 %v141, %v137
    %v150 = vpack.c.b16 %v142, %v138
    %v151 = vpack.c.b16 %v143, %v139
    %v152 = vpack.c.b16 %v144, %v140
    %vm161 = vcmask 261120
    %v163 = vsel %vm161, %v90, 0
    %165 = vmatprep.subr.bf16.mxu0 0
    %166 = vmatpush1.bf16.msra.mxu0 0
    %167 = vmatprep.subr.bf16.mxu0 0
    %168 = vmatpush1.bf16.msra.mxu0 0
    %169 = vmatprep.subr.bf16.mxu0 0
    %170 = vmatpush1.bf16.msra.mxu0 0
    %171 = vmatprep.subr.bf16.mxu0 0
    %172 = vmatpush1.bf16.msra.mxu0 0
    %173 = vmatprep.subr.bf16.mxu0 0
    %174 = vmatpush1.bf16.msra.mxu0 0
    %175 = vmatprep.subr.bf16.mxu0 0
    %176 = vmatpush1.bf16.msra.mxu0 0
    %177 = vmatprep.subr.bf16.mxu0 %v150
    %178 = vmatpush1.bf16.msra.mxu0 %v149
    %179 = vmatprep.subr.bf16.mxu0 %v146
    %180 = vmatpush1.bf16.msra.mxu0 %v145
    %181 = vmatprep.subr.bf16.mxu0 0
    %182 = vmatpush2.bf16.msra.mxu0 0
    %183 = vmatprep.subr.bf16.mxu0 0
    %184 = vmatpush2.bf16.msra.mxu0 0
    %185 = vmatprep.subr.bf16.mxu0 0
    %186 = vmatpush2.bf16.msra.mxu0 0
    %187 = vmatprep.subr.bf16.mxu0 0
    %188 = vmatpush2.bf16.msra.mxu0 0
    %189 = vmatprep.subr.bf16.mxu0 0
    %190 = vmatpush2.bf16.msra.mxu0 0
    %191 = vmatprep.subr.bf16.mxu0 0
    %192 = vmatpush2.bf16.msra.mxu0 0
    %193 = vmatprep.subr.bf16.mxu0 0
    %194 = vmatpush2.bf16.msra.mxu0 0
    %195 = vmatprep.subr.bf16.mxu0 0
    %196 = vmatpush2.bf16.msra.mxu0 0
    %197 = vmatprep.mubr.bf16.mxu0 0
    %198 = vmatmul.mubr.bf16.gmra.mxu0 %v163
    %v199 = vpop.f32.mrf.mxu0
    %v200 = vadd.f32 %v104, %v199
    %v201 = vpop.f32.mrf.mxu0
    %v202 = vadd.f32 %v108, %v201
    %v203 = vpop.f32.mrf.mxu0
    %v204 = vpop.f32.mrf.mxu0
    %205 = vdwg.mxu0
    %206 = vmatprep.subr.bf16.mxu0 0
    %207 = vmatpush1.bf16.msra.mxu0 0
    %208 = vmatprep.subr.bf16.mxu0 0
    %209 = vmatpush1.bf16.msra.mxu0 0
    %210 = vmatprep.subr.bf16.mxu0 0
    %211 = vmatpush1.bf16.msra.mxu0 0
    %212 = vmatprep.subr.bf16.mxu0 0
    %213 = vmatpush1.bf16.msra.mxu0 0
    %214 = vmatprep.subr.bf16.mxu0 0
    %215 = vmatpush1.bf16.msra.mxu0 0
    %216 = vmatprep.subr.bf16.mxu0 0
    %217 = vmatpush1.bf16.msra.mxu0 0
    %218 = vmatprep.subr.bf16.mxu0 %v152
    %219 = vmatpush1.bf16.msra.mxu0 %v151
    %220 = vmatprep.subr.bf16.mxu0 %v148
    %221 = vmatpush1.bf16.msra.mxu0 %v147
    %222 = vmatprep.subr.bf16.mxu0 0
    %223 = vmatpush2.bf16.msra.mxu0 0
    %224 = vmatprep.subr.bf16.mxu0 0
    %225 = vmatpush2.bf16.msra.mxu0 0
    %226 = vmatprep.subr.bf16.mxu0 0
    %227 = vmatpush2.bf16.msra.mxu0 0
    %228 = vmatprep.subr.bf16.mxu0 0
    %229 = vmatpush2.bf16.msra.mxu0 0
    %230 = vmatprep.subr.bf16.mxu0 0
    %231 = vmatpush2.bf16.msra.mxu0 0
    %232 = vmatprep.subr.bf16.mxu0 0
    %233 = vmatpush2.bf16.msra.mxu0 0
    %234 = vmatprep.subr.bf16.mxu0 0
    %235 = vmatpush2.bf16.msra.mxu0 0
    %236 = vmatprep.subr.bf16.mxu0 0
    %237 = vmatpush2.bf16.msra.mxu0 0
    %238 = vmatprep.mubr.bf16.mxu0 0
    %239 = vmatmul.mubr.bf16.gmra.mxu0 %v163
    %v240 = vpop.f32.mrf.mxu0
    %v241 = vadd.f32 %v112, %v240
    %v242 = vpop.f32.mrf.mxu0
    %v243 = vadd.f32 %v116, %v242
    %v244 = vpop.f32.mrf.mxu0
    %v245 = vpop.f32.mrf.mxu0
    %246 = vdwg.mxu0
    %v247 = vmin.f32 %v200, 30.0
    %v248 = vmin.f32 %v202, 30.0
    %v249 = vmin.f32 %v241, 30.0
    %v250 = vmin.f32 %v243, 30.0
    %v251 = vmul.f32 %v247, 1.442695
    %v252 = vpow.pop %v251
    %v253 = vmul.f32 %v248, 1.442695
    %v254 = vpow.pop %v253
    %v255 = vmul.f32 %v249, 1.442695
    %v256 = vpow.pop %v255
    %v257 = vmul.f32 %v250, 1.442695
    %v258 = vpow.pop %v257
    %v259 = vadd.f32 %v252, 1.0
    %v260 = vadd.f32 %v254, 1.0
    %v261 = vadd.f32 %v256, 1.0
    %v262 = vadd.f32 %v258, 1.0
    %v263 = vmul.f32 %v259, %v259
    %v264 = vmul.f32 %v260, %v260
    %v265 = vmul.f32 %v261, %v261
    %v266 = vmul.f32 %v262, %v262
    %v267 = vadd.f32 %v263, 1.0
    %v268 = vadd.f32 %v264, 1.0
    %v269 = vadd.f32 %v265, 1.0
    %v270 = vadd.f32 %v266, 1.0
    %v271 = vmul.f32 %v200, 2.0
    %v272 = vmul.f32 %v202, 2.0
    %v273 = vmul.f32 %v241, 2.0
    %v274 = vmul.f32 %v243, 2.0
    %v275 = vrcp.pop %v267
    %v276 = vrcp.pop %v268
    %v277 = vrcp.pop %v269
    %v278 = vrcp.pop %v270
    %v279 = vmul.f32 %v271, %v275
    %v280 = vmul.f32 %v272, %v276
    %v281 = vmul.f32 %v273, %v277
    %v282 = vmul.f32 %v274, %v278
    %v283 = vsub.f32 %v200, %v279
    %v284 = vsub.f32 %v202, %v280
    %v285 = vsub.f32 %v241, %v281
    %v286 = vsub.f32 %v243, %v282
    %v287 = vpack.c.bf16 %v283, %v283
    %v288 = vpack.c.bf16 %v284, %v284
    %v289 = vpack.c.bf16 %v285, %v285
    %v290 = vpack.c.bf16 %v286, %v286
    %v291 = vld [vmem:[#allocation8] sm:$0xff]
    %v292 = vld [vmem:[#allocation8 + $0x8] sm:$0xff]
    %v293 = vld [vmem:[#allocation8 + $0x10] sm:$0xff]
    %v294 = vld [vmem:[#allocation8 + $0x18] sm:$0xff]
    %v295 = vld [vmem:[#allocation8 + $0x20] sm:$0xff]
    %v296 = vld [vmem:[#allocation8 + $0x28] sm:$0xff]
    %v297 = vld [vmem:[#allocation8 + $0x30] sm:$0xff]
    %v298 = vld [vmem:[#allocation8 + $0x38] sm:$0xff]
    %v299 = vld [vmem:[#allocation8 + $0x40] sm:$0xff]
    %v300 = vld [vmem:[#allocation8 + $0x48] sm:$0xff]
    %v301 = vld [vmem:[#allocation8 + $0x50] sm:$0xff]
    %v302 = vld [vmem:[#allocation8 + $0x58] sm:$0xff]
    %v303 = vld [vmem:[#allocation8 + $0x60] sm:$0xff]
    %v304 = vld [vmem:[#allocation8 + $0x68] sm:$0xff]
    %v305 = vld [vmem:[#allocation8 + $0x70] sm:$0xff]
    %v306 = vld [vmem:[#allocation8 + $0x78] sm:$0xff]
    %v307 = vld [vmem:[#allocation8 + $0x80] sm:$0xff]
    %v308 = vld [vmem:[#allocation8 + $0x88] sm:$0xff]
    %v309 = vld [vmem:[#allocation8 + $0x90] sm:$0xff]
    %v310 = vld [vmem:[#allocation8 + $0x98] sm:$0xff]
    %v311 = vld [vmem:[#allocation8 + $0xa0] sm:$0xff]
    %v312 = vld [vmem:[#allocation8 + $0xa8] sm:$0xff]
    %v313 = vld [vmem:[#allocation8 + $0xb0] sm:$0xff]
    %v314 = vld [vmem:[#allocation8 + $0xb8] sm:$0xff]
    %v315 = vld [vmem:[#allocation8 + $0xc0] sm:$0xff]
    %v316 = vld [vmem:[#allocation8 + $0xc8] sm:$0xff]
    %v317 = vld [vmem:[#allocation8 + $0xd0] sm:$0xff]
    %v318 = vld [vmem:[#allocation8 + $0xd8] sm:$0xff]
    %v319 = vld [vmem:[#allocation8 + $0xe0] sm:$0xff]
    %v320 = vld [vmem:[#allocation8 + $0xe8] sm:$0xff]
    %v321 = vld [vmem:[#allocation8 + $0xf0] sm:$0xff]
    %v322 = vld [vmem:[#allocation8 + $0xf8] sm:$0xff]
    %v323 = vld [vmem:[#allocation8 + $0x100] sm:$0xff]
    %v324 = vld [vmem:[#allocation8 + $0x108] sm:$0xff]
    %v325 = vld [vmem:[#allocation8 + $0x110] sm:$0xff]
    %v326 = vld [vmem:[#allocation8 + $0x118] sm:$0xff]
    %v327 = vld [vmem:[#allocation8 + $0x120] sm:$0xff]
    %v328 = vld [vmem:[#allocation8 + $0x128] sm:$0xff]
    %v329 = vld [vmem:[#allocation8 + $0x130] sm:$0xff]
    %v330 = vld [vmem:[#allocation8 + $0x138] sm:$0xff]
    %v331 = vld [vmem:[#allocation8 + $0x140] sm:$0xff]
    %v332 = vld [vmem:[#allocation8 + $0x148] sm:$0xff]
    %v333 = vld [vmem:[#allocation8 + $0x150] sm:$0xff]
    %v334 = vld [vmem:[#allocation8 + $0x158] sm:$0xff]
    %v335 = vld [vmem:[#allocation8 + $0x160] sm:$0xff]
    %v336 = vld [vmem:[#allocation8 + $0x168] sm:$0xff]
    %v337 = vld [vmem:[#allocation8 + $0x170] sm:$0xff]
    %v338 = vld [vmem:[#allocation8 + $0x178] sm:$0xff]
    %v339 = vld [vmem:[#allocation8 + $0x180] sm:$0xff]
    %v340 = vld [vmem:[#allocation8 + $0x188] sm:$0xff]
    %v341 = vld [vmem:[#allocation8 + $0x190] sm:$0xff]
    %v342 = vld [vmem:[#allocation8 + $0x198] sm:$0xff]
    %v343 = vld [vmem:[#allocation8 + $0x1a0] sm:$0xff]
    %v344 = vld [vmem:[#allocation8 + $0x1a8] sm:$0xff]
    %v345 = vld [vmem:[#allocation8 + $0x1b0] sm:$0xff]
    %v346 = vld [vmem:[#allocation8 + $0x1b8] sm:$0xff]
    %v347 = vld [vmem:[#allocation8 + $0x1c0] sm:$0xff]
    %v348 = vld [vmem:[#allocation8 + $0x1c8] sm:$0xff]
    %v349 = vld [vmem:[#allocation8 + $0x1d0] sm:$0xff]
    %v350 = vld [vmem:[#allocation8 + $0x1d8] sm:$0xff]
    %v351 = vld [vmem:[#allocation8 + $0x1e0] sm:$0xff]
    %v352 = vld [vmem:[#allocation8 + $0x1e8] sm:$0xff]
    %v353 = vld [vmem:[#allocation8 + $0x1f0] sm:$0xff]
    %v354 = vld [vmem:[#allocation8 + $0x1f8] sm:$0xff]
    %v355 = vld [vmem:[#allocation8 + $0x200] sm:$0xff]
    %v356 = vld [vmem:[#allocation8 + $0x208] sm:$0xff]
    %v357 = vld [vmem:[#allocation8 + $0x210] sm:$0xff]
    %v358 = vld [vmem:[#allocation8 + $0x218] sm:$0xff]
    %v359 = vld [vmem:[#allocation8 + $0x220] sm:$0xff]
    %v360 = vld [vmem:[#allocation8 + $0x228] sm:$0xff]
    %v361 = vld [vmem:[#allocation8 + $0x230] sm:$0xff]
    %v362 = vld [vmem:[#allocation8 + $0x238] sm:$0xff]
    %v363 = vld [vmem:[#allocation8 + $0x240] sm:$0xff]
    %v364 = vld [vmem:[#allocation8 + $0x248] sm:$0xff]
    %v365 = vld [vmem:[#allocation8 + $0x250] sm:$0xff]
    %v366 = vld [vmem:[#allocation8 + $0x258] sm:$0xff]
    %v367 = vld [vmem:[#allocation8 + $0x260] sm:$0xff]
    %v368 = vld [vmem:[#allocation8 + $0x268] sm:$0xff]
    %v369 = vld [vmem:[#allocation8 + $0x270] sm:$0xff]
    %v370 = vld [vmem:[#allocation8 + $0x278] sm:$0xff]
    %v371 = vld [vmem:[#allocation8 + $0x280] sm:$0xff]
    %v372 = vld [vmem:[#allocation8 + $0x288] sm:$0xff]
    %v373 = vld [vmem:[#allocation8 + $0x290] sm:$0xff]
    %v374 = vld [vmem:[#allocation8 + $0x298] sm:$0xff]
    %v375 = vld [vmem:[#allocation8 + $0x2a0] sm:$0xff]
    %v376 = vld [vmem:[#allocation8 + $0x2a8] sm:$0xff]
    %v377 = vld [vmem:[#allocation8 + $0x2b0] sm:$0xff]
    %v378 = vld [vmem:[#allocation8 + $0x2b8] sm:$0xff]
    %v379 = vld [vmem:[#allocation8 + $0x2c0] sm:$0xff]
    %v380 = vld [vmem:[#allocation8 + $0x2c8] sm:$0xff]
    %v381 = vld [vmem:[#allocation8 + $0x2d0] sm:$0xff]
    %v382 = vld [vmem:[#allocation8 + $0x2d8] sm:$0xff]
    %v383 = vld [vmem:[#allocation8 + $0x2e0] sm:$0xff]
    %v384 = vld [vmem:[#allocation8 + $0x2e8] sm:$0xff]
    %v385 = vld [vmem:[#allocation8 + $0x2f0] sm:$0xff]
    %v386 = vld [vmem:[#allocation8 + $0x2f8] sm:$0xff]
    %v387 = vld [vmem:[#allocation8 + $0x300] sm:$0xff]
    %v388 = vld [vmem:[#allocation8 + $0x308] sm:$0xff]
    %v389 = vld [vmem:[#allocation8 + $0x310] sm:$0xff]
    %v390 = vld [vmem:[#allocation8 + $0x318] sm:$0xff]
    %v391 = vld [vmem:[#allocation8 + $0x320] sm:$0xff]
    %v392 = vld [vmem:[#allocation8 + $0x328] sm:$0xff]
    %v393 = vld [vmem:[#allocation8 + $0x330] sm:$0xff]
    %v394 = vld [vmem:[#allocation8 + $0x338] sm:$0xff]
    %v395 = vld [vmem:[#allocation8 + $0x340] sm:$0xff]
    %v396 = vld [vmem:[#allocation8 + $0x348] sm:$0xff]
    %v397 = vld [vmem:[#allocation8 + $0x350] sm:$0xff]
    %v398 = vld [vmem:[#allocation8 + $0x358] sm:$0xff]
    %v399 = vld [vmem:[#allocation8 + $0x360] sm:$0xff]
    %v400 = vld [vmem:[#allocation8 + $0x368] sm:$0xff]
    %v401 = vld [vmem:[#allocation8 + $0x370] sm:$0xff]
    %v402 = vld [vmem:[#allocation8 + $0x378] sm:$0xff]
    %v403 = vld [vmem:[#allocation8 + $0x380] sm:$0xff]
    %v404 = vld [vmem:[#allocation8 + $0x388] sm:$0xff]
    %v405 = vld [vmem:[#allocation8 + $0x390] sm:$0xff]
    %v406 = vld [vmem:[#allocation8 + $0x398] sm:$0xff]
    %v407 = vld [vmem:[#allocation8 + $0x3a0] sm:$0xff]
    %v408 = vld [vmem:[#allocation8 + $0x3a8] sm:$0xff]
    %v409 = vld [vmem:[#allocation8 + $0x3b0] sm:$0xff]
    %v410 = vld [vmem:[#allocation8 + $0x3b8] sm:$0xff]
    %v411 = vld [vmem:[#allocation8 + $0x3c0] sm:$0xff]
    %v412 = vld [vmem:[#allocation8 + $0x3c8] sm:$0xff]
    %v413 = vld [vmem:[#allocation8 + $0x3d0] sm:$0xff]
    %v414 = vld [vmem:[#allocation8 + $0x3d8] sm:$0xff]
    %v415 = vld [vmem:[#allocation8 + $0x3e0] sm:$0xff]
    %v416 = vld [vmem:[#allocation8 + $0x3e8] sm:$0xff]
    %v417 = vld [vmem:[#allocation8 + $0x3f0] sm:$0xff]
    %v418 = vld [vmem:[#allocation8 + $0x3f8] sm:$0xff]
    %v419 = vld [vmem:[%s4] sm:$0xf]
    %v421 = vlaneseq
    %v422 = vshrl.u32 %v421, 7
    %v423 = vsub.s32 0, %v422
    %v424 = vrot.slane %v419, %v423
    %v425 = vlaneseq
    %v426 = vshrl.u32 %v425, 7
    %v427 = vsub.s32 1, %v426
    %v428 = vrot.slane %v419, %v427
    %v429 = vlaneseq
    %v430 = vshrl.u32 %v429, 7
    %v431 = vsub.s32 2, %v430
    %v432 = vrot.slane %v419, %v431
    %v433 = vlaneseq
    %v434 = vshrl.u32 %v433, 7
    %v435 = vsub.s32 3, %v434
    %v436 = vrot.slane %v419, %v435
    %v569 = vunpack.c.l.b16 %v291
    %v570 = vunpack.c.h.b16 %v291
    %v571 = vunpack.c.l.b16 %v292
    %v572 = vunpack.c.h.b16 %v292
    %v573 = vunpack.c.l.b16 %v293
    %v574 = vunpack.c.h.b16 %v293
    %v575 = vunpack.c.l.b16 %v294
    %v576 = vunpack.c.h.b16 %v294
    %v577 = vunpack.c.l.b16 %v295
    %v578 = vunpack.c.h.b16 %v295
    %v579 = vunpack.c.l.b16 %v296
    %v580 = vunpack.c.h.b16 %v296
    %v581 = vunpack.c.l.b16 %v297
    %v582 = vunpack.c.h.b16 %v297
    %v583 = vunpack.c.l.b16 %v298
    %v584 = vunpack.c.h.b16 %v298
    %v585 = vunpack.c.l.b16 %v299
    %v586 = vunpack.c.h.b16 %v299
    %v587 = vunpack.c.l.b16 %v300
    %v588 = vunpack.c.h.b16 %v300
    %v589 = vunpack.c.l.b16 %v301
    %v590 = vunpack.c.h.b16 %v301
    %v591 = vunpack.c.l.b16 %v302
    %v592 = vunpack.c.h.b16 %v302
    %v593 = vunpack.c.l.b16 %v303
    %v594 = vunpack.c.h.b16 %v303
    %v595 = vunpack.c.l.b16 %v304
    %v596 = vunpack.c.h.b16 %v304
    %v597 = vunpack.c.l.b16 %v305
    %v598 = vunpack.c.h.b16 %v305
    %v599 = vunpack.c.l.b16 %v306
    %v600 = vunpack.c.h.b16 %v306
    %v601 = vunpack.c.l.b16 %v307
    %v602 = vunpack.c.h.b16 %v307
    %v603 = vunpack.c.l.b16 %v308
    %v604 = vunpack.c.h.b16 %v308
    %v605 = vunpack.c.l.b16 %v309
    %v606 = vunpack.c.h.b16 %v309
    %v607 = vunpack.c.l.b16 %v310
    %v608 = vunpack.c.h.b16 %v310
    %v609 = vunpack.c.l.b16 %v311
    %v610 = vunpack.c.h.b16 %v311
    %v611 = vunpack.c.l.b16 %v312
    %v612 = vunpack.c.h.b16 %v312
    %v613 = vunpack.c.l.b16 %v313
    %v614 = vunpack.c.h.b16 %v313
    %v615 = vunpack.c.l.b16 %v314
    %v616 = vunpack.c.h.b16 %v314
    %v617 = vunpack.c.l.b16 %v315
    %v618 = vunpack.c.h.b16 %v315
    %v619 = vunpack.c.l.b16 %v316
    %v620 = vunpack.c.h.b16 %v316
    %v621 = vunpack.c.l.b16 %v317
    %v622 = vunpack.c.h.b16 %v317
    %v623 = vunpack.c.l.b16 %v318
    %v624 = vunpack.c.h.b16 %v318
    %v625 = vunpack.c.l.b16 %v319
    %v626 = vunpack.c.h.b16 %v319
    %v627 = vunpack.c.l.b16 %v320
    %v628 = vunpack.c.h.b16 %v320
    %v629 = vunpack.c.l.b16 %v321
    %v630 = vunpack.c.h.b16 %v321
    %v631 = vunpack.c.l.b16 %v322
    %v632 = vunpack.c.h.b16 %v322
    %v633 = vunpack.c.l.b16 %v323
    %v634 = vunpack.c.h.b16 %v323
    %v635 = vunpack.c.l.b16 %v324
    %v636 = vunpack.c.h.b16 %v324
    %v637 = vunpack.c.l.b16 %v325
    %v638 = vunpack.c.h.b16 %v325
    %v639 = vunpack.c.l.b16 %v326
    %v640 = vunpack.c.h.b16 %v326
    %v641 = vunpack.c.l.b16 %v327
    %v642 = vunpack.c.h.b16 %v327
    %v643 = vunpack.c.l.b16 %v328
    %v644 = vunpack.c.h.b16 %v328
    %v645 = vunpack.c.l.b16 %v329
    %v646 = vunpack.c.h.b16 %v329
    %v647 = vunpack.c.l.b16 %v330
    %v648 = vunpack.c.h.b16 %v330
    %v649 = vunpack.c.l.b16 %v331
    %v650 = vunpack.c.h.b16 %v331
    %v651 = vunpack.c.l.b16 %v332
    %v652 = vunpack.c.h.b16 %v332
    %v653 = vunpack.c.l.b16 %v333
    %v654 = vunpack.c.h.b16 %v333
    %v655 = vunpack.c.l.b16 %v334
    %v656 = vunpack.c.h.b16 %v334
    %v657 = vunpack.c.l.b16 %v335
    %v658 = vunpack.c.h.b16 %v335
    %v659 = vunpack.c.l.b16 %v336
    %v660 = vunpack.c.h.b16 %v336
    %v661 = vunpack.c.l.b16 %v337
    %v662 = vunpack.c.h.b16 %v337
    %v663 = vunpack.c.l.b16 %v338
    %v664 = vunpack.c.h.b16 %v338
    %v665 = vunpack.c.l.b16 %v339
    %v666 = vunpack.c.h.b16 %v339
    %v667 = vunpack.c.l.b16 %v340
    %v668 = vunpack.c.h.b16 %v340
    %v669 = vunpack.c.l.b16 %v341
    %v670 = vunpack.c.h.b16 %v341
    %v671 = vunpack.c.l.b16 %v342
    %v672 = vunpack.c.h.b16 %v342
    %v673 = vunpack.c.l.b16 %v343
    %v674 = vunpack.c.h.b16 %v343
    %v675 = vunpack.c.l.b16 %v344
    %v676 = vunpack.c.h.b16 %v344
    %v677 = vunpack.c.l.b16 %v345
    %v678 = vunpack.c.h.b16 %v345
    %v679 = vunpack.c.l.b16 %v346
    %v680 = vunpack.c.h.b16 %v346
    %v681 = vunpack.c.l.b16 %v347
    %v682 = vunpack.c.h.b16 %v347
    %v683 = vunpack.c.l.b16 %v348
    %v684 = vunpack.c.h.b16 %v348
    %v685 = vunpack.c.l.b16 %v349
    %v686 = vunpack.c.h.b16 %v349
    %v687 = vunpack.c.l.b16 %v350
    %v688 = vunpack.c.h.b16 %v350
    %v689 = vunpack.c.l.b16 %v351
    %v690 = vunpack.c.h.b16 %v351
    %v691 = vunpack.c.l.b16 %v352
    %v692 = vunpack.c.h.b16 %v352
    %v693 = vunpack.c.l.b16 %v353
    %v694 = vunpack.c.h.b16 %v353
    %v695 = vunpack.c.l.b16 %v354
    %v696 = vunpack.c.h.b16 %v354
    %v697 = vunpack.c.l.b16 %v355
    %v698 = vunpack.c.h.b16 %v355
    %v699 = vunpack.c.l.b16 %v356
    %v700 = vunpack.c.h.b16 %v356
    %v701 = vunpack.c.l.b16 %v357
    %v702 = vunpack.c.h.b16 %v357
    %v703 = vunpack.c.l.b16 %v358
    %v704 = vunpack.c.h.b16 %v358
    %v705 = vunpack.c.l.b16 %v359
    %v706 = vunpack.c.h.b16 %v359
    %v707 = vunpack.c.l.b16 %v360
    %v708 = vunpack.c.h.b16 %v360
    %v709 = vunpack.c.l.b16 %v361
    %v710 = vunpack.c.h.b16 %v361
    %v711 = vunpack.c.l.b16 %v362
    %v712 = vunpack.c.h.b16 %v362
    %v713 = vunpack.c.l.b16 %v363
    %v714 = vunpack.c.h.b16 %v363
    %v715 = vunpack.c.l.b16 %v364
    %v716 = vunpack.c.h.b16 %v364
    %v717 = vunpack.c.l.b16 %v365
    %v718 = vunpack.c.h.b16 %v365
    %v719 = vunpack.c.l.b16 %v366
    %v720 = vunpack.c.h.b16 %v366
    %v721 = vunpack.c.l.b16 %v367
    %v722 = vunpack.c.h.b16 %v367
    %v723 = vunpack.c.l.b16 %v368
    %v724 = vunpack.c.h.b16 %v368
    %v725 = vunpack.c.l.b16 %v369
    %v726 = vunpack.c.h.b16 %v369
    %v727 = vunpack.c.l.b16 %v370
    %v728 = vunpack.c.h.b16 %v370
    %v729 = vunpack.c.l.b16 %v371
    %v730 = vunpack.c.h.b16 %v371
    %v731 = vunpack.c.l.b16 %v372
    %v732 = vunpack.c.h.b16 %v372
    %v733 = vunpack.c.l.b16 %v373
    %v734 = vunpack.c.h.b16 %v373
    %v735 = vunpack.c.l.b16 %v374
    %v736 = vunpack.c.h.b16 %v374
    %v737 = vunpack.c.l.b16 %v375
    %v738 = vunpack.c.h.b16 %v375
    %v739 = vunpack.c.l.b16 %v376
    %v740 = vunpack.c.h.b16 %v376
    %v741 = vunpack.c.l.b16 %v377
    %v742 = vunpack.c.h.b16 %v377
    %v743 = vunpack.c.l.b16 %v378
    %v744 = vunpack.c.h.b16 %v378
    %v745 = vunpack.c.l.b16 %v379
    %v746 = vunpack.c.h.b16 %v379
    %v747 = vunpack.c.l.b16 %v380
    %v748 = vunpack.c.h.b16 %v380
    %v749 = vunpack.c.l.b16 %v381
    %v750 = vunpack.c.h.b16 %v381
    %v751 = vunpack.c.l.b16 %v382
    %v752 = vunpack.c.h.b16 %v382
    %v753 = vunpack.c.l.b16 %v383
    %v754 = vunpack.c.h.b16 %v383
    %v755 = vunpack.c.l.b16 %v384
    %v756 = vunpack.c.h.b16 %v384
    %v757 = vunpack.c.l.b16 %v385
    %v758 = vunpack.c.h.b16 %v385
    %v759 = vunpack.c.l.b16 %v386
    %v760 = vunpack.c.h.b16 %v386
    %v761 = vunpack.c.l.b16 %v387
    %v762 = vunpack.c.h.b16 %v387
    %v763 = vunpack.c.l.b16 %v388
    %v764 = vunpack.c.h.b16 %v388
    %v765 = vunpack.c.l.b16 %v389
    %v766 = vunpack.c.h.b16 %v389
    %v767 = vunpack.c.l.b16 %v390
    %v768 = vunpack.c.h.b16 %v390
    %v769 = vunpack.c.l.b16 %v391
    %v770 = vunpack.c.h.b16 %v391
    %v771 = vunpack.c.l.b16 %v392
    %v772 = vunpack.c.h.b16 %v392
    %v773 = vunpack.c.l.b16 %v393
    %v774 = vunpack.c.h.b16 %v393
    %v775 = vunpack.c.l.b16 %v394
    %v776 = vunpack.c.h.b16 %v394
    %v777 = vunpack.c.l.b16 %v395
    %v778 = vunpack.c.h.b16 %v395
    %v779 = vunpack.c.l.b16 %v396
    %v780 = vunpack.c.h.b16 %v396
    %v781 = vunpack.c.l.b16 %v397
    %v782 = vunpack.c.h.b16 %v397
    %v783 = vunpack.c.l.b16 %v398
    %v784 = vunpack.c.h.b16 %v398
    %v785 = vunpack.c.l.b16 %v399
    %v786 = vunpack.c.h.b16 %v399
    %v787 = vunpack.c.l.b16 %v400
    %v788 = vunpack.c.h.b16 %v400
    %v789 = vunpack.c.l.b16 %v401
    %v790 = vunpack.c.h.b16 %v401
    %v791 = vunpack.c.l.b16 %v402
    %v792 = vunpack.c.h.b16 %v402
    %v793 = vunpack.c.l.b16 %v403
    %v794 = vunpack.c.h.b16 %v403
    %v795 = vunpack.c.l.b16 %v404
    %v796 = vunpack.c.h.b16 %v404
    %v797 = vunpack.c.l.b16 %v405
    %v798 = vunpack.c.h.b16 %v405
    %v799 = vunpack.c.l.b16 %v406
    %v800 = vunpack.c.h.b16 %v406
    %v801 = vunpack.c.l.b16 %v407
    %v802 = vunpack.c.h.b16 %v407
    %v803 = vunpack.c.l.b16 %v408
    %v804 = vunpack.c.h.b16 %v408
    %v805 = vunpack.c.l.b16 %v409
    %v806 = vunpack.c.h.b16 %v409
    %v807 = vunpack.c.l.b16 %v410
    %v808 = vunpack.c.h.b16 %v410
    %v809 = vunpack.c.l.b16 %v411
    %v810 = vunpack.c.h.b16 %v411
    %v811 = vunpack.c.l.b16 %v412
    %v812 = vunpack.c.h.b16 %v412
    %v813 = vunpack.c.l.b16 %v413
    %v814 = vunpack.c.h.b16 %v413
    %v815 = vunpack.c.l.b16 %v414
    %v816 = vunpack.c.h.b16 %v414
    %v817 = vunpack.c.l.b16 %v415
    %v818 = vunpack.c.h.b16 %v415
    %v819 = vunpack.c.l.b16 %v416
    %v820 = vunpack.c.h.b16 %v416
    %v821 = vunpack.c.l.b16 %v417
    %v822 = vunpack.c.h.b16 %v417
    %v823 = vunpack.c.l.b16 %v418
    %v824 = vunpack.c.h.b16 %v418
    %v825 = vpack.c.b16 %v573, %v569
    %v826 = vpack.c.b16 %v574, %v570
    %v827 = vpack.c.b16 %v575, %v571
    %v828 = vpack.c.b16 %v576, %v572
    %v829 = vpack.c.b16 %v581, %v577
    %v830 = vpack.c.b16 %v582, %v578
    %v831 = vpack.c.b16 %v583, %v579
    %v832 = vpack.c.b16 %v584, %v580
    %v833 = vpack.c.b16 %v589, %v585
    %v834 = vpack.c.b16 %v590, %v586
    %v835 = vpack.c.b16 %v591, %v587
    %v836 = vpack.c.b16 %v592, %v588
    %v837 = vpack.c.b16 %v597, %v593
    %v838 = vpack.c.b16 %v598, %v594
    %v839 = vpack.c.b16 %v599, %v595
    %v840 = vpack.c.b16 %v600, %v596
    %v841 = vpack.c.b16 %v605, %v601
    %v842 = vpack.c.b16 %v606, %v602
    %v843 = vpack.c.b16 %v607, %v603
    %v844 = vpack.c.b16 %v608, %v604
    %v845 = vpack.c.b16 %v613, %v609
    %v846 = vpack.c.b16 %v614, %v610
    %v847 = vpack.c.b16 %v615, %v611
    %v848 = vpack.c.b16 %v616, %v612
    %v849 = vpack.c.b16 %v621, %v617
    %v850 = vpack.c.b16 %v622, %v618
    %v851 = vpack.c.b16 %v623, %v619
    %v852 = vpack.c.b16 %v624, %v620
    %v853 = vpack.c.b16 %v629, %v625
    %v854 = vpack.c.b16 %v630, %v626
    %v855 = vpack.c.b16 %v631, %v627
    %v856 = vpack.c.b16 %v632, %v628
    %v857 = vpack.c.b16 %v637, %v633
    %v858 = vpack.c.b16 %v638, %v634
    %v859 = vpack.c.b16 %v639, %v635
    %v860 = vpack.c.b16 %v640, %v636
    %v861 = vpack.c.b16 %v645, %v641
    %v862 = vpack.c.b16 %v646, %v642
    %v863 = vpack.c.b16 %v647, %v643
    %v864 = vpack.c.b16 %v648, %v644
    %v865 = vpack.c.b16 %v653, %v649
    %v866 = vpack.c.b16 %v654, %v650
    %v867 = vpack.c.b16 %v655, %v651
    %v868 = vpack.c.b16 %v656, %v652
    %v869 = vpack.c.b16 %v661, %v657
    %v870 = vpack.c.b16 %v662, %v658
    %v871 = vpack.c.b16 %v663, %v659
    %v872 = vpack.c.b16 %v664, %v660
    %v873 = vpack.c.b16 %v669, %v665
    %v874 = vpack.c.b16 %v670, %v666
    %v875 = vpack.c.b16 %v671, %v667
    %v876 = vpack.c.b16 %v672, %v668
    %v877 = vpack.c.b16 %v677, %v673
    %v878 = vpack.c.b16 %v678, %v674
    %v879 = vpack.c.b16 %v679, %v675
    %v880 = vpack.c.b16 %v680, %v676
    %v881 = vpack.c.b16 %v685, %v681
    %v882 = vpack.c.b16 %v686, %v682
    %v883 = vpack.c.b16 %v687, %v683
    %v884 = vpack.c.b16 %v688, %v684
    %v885 = vpack.c.b16 %v693, %v689
    %v886 = vpack.c.b16 %v694, %v690
    %v887 = vpack.c.b16 %v695, %v691
    %v888 = vpack.c.b16 %v696, %v692
    %v889 = vpack.c.b16 %v701, %v697
    %v890 = vpack.c.b16 %v702, %v698
    %v891 = vpack.c.b16 %v703, %v699
    %v892 = vpack.c.b16 %v704, %v700
    %v893 = vpack.c.b16 %v709, %v705
    %v894 = vpack.c.b16 %v710, %v706
    %v895 = vpack.c.b16 %v711, %v707
    %v896 = vpack.c.b16 %v712, %v708
    %v897 = vpack.c.b16 %v717, %v713
    %v898 = vpack.c.b16 %v718, %v714
    %v899 = vpack.c.b16 %v719, %v715
    %v900 = vpack.c.b16 %v720, %v716
    %v901 = vpack.c.b16 %v725, %v721
    %v902 = vpack.c.b16 %v726, %v722
    %v903 = vpack.c.b16 %v727, %v723
    %v904 = vpack.c.b16 %v728, %v724
    %v905 = vpack.c.b16 %v733, %v729
    %v906 = vpack.c.b16 %v734, %v730
    %v907 = vpack.c.b16 %v735, %v731
    %v908 = vpack.c.b16 %v736, %v732
    %v909 = vpack.c.b16 %v741, %v737
    %v910 = vpack.c.b16 %v742, %v738
    %v911 = vpack.c.b16 %v743, %v739
    %v912 = vpack.c.b16 %v744, %v740
    %v913 = vpack.c.b16 %v749, %v745
    %v914 = vpack.c.b16 %v750, %v746
    %v915 = vpack.c.b16 %v751, %v747
    %v916 = vpack.c.b16 %v752, %v748
    %v917 = vpack.c.b16 %v757, %v753
    %v918 = vpack.c.b16 %v758, %v754
    %v919 = vpack.c.b16 %v759, %v755
    %v920 = vpack.c.b16 %v760, %v756
    %v921 = vpack.c.b16 %v765, %v761
    %v922 = vpack.c.b16 %v766, %v762
    %v923 = vpack.c.b16 %v767, %v763
    %v924 = vpack.c.b16 %v768, %v764
    %v925 = vpack.c.b16 %v773, %v769
    %v926 = vpack.c.b16 %v774, %v770
    %v927 = vpack.c.b16 %v775, %v771
    %v928 = vpack.c.b16 %v776, %v772
    %v929 = vpack.c.b16 %v781, %v777
    %v930 = vpack.c.b16 %v782, %v778
    %v931 = vpack.c.b16 %v783, %v779
    %v932 = vpack.c.b16 %v784, %v780
    %v933 = vpack.c.b16 %v789, %v785
    %v934 = vpack.c.b16 %v790, %v786
    %v935 = vpack.c.b16 %v791, %v787
    %v936 = vpack.c.b16 %v792, %v788
    %v937 = vpack.c.b16 %v797, %v793
    %v938 = vpack.c.b16 %v798, %v794
    %v939 = vpack.c.b16 %v799, %v795
    %v940 = vpack.c.b16 %v800, %v796
    %v941 = vpack.c.b16 %v805, %v801
    %v942 = vpack.c.b16 %v806, %v802
    %v943 = vpack.c.b16 %v807, %v803
    %v944 = vpack.c.b16 %v808, %v804
    %v945 = vpack.c.b16 %v813, %v809
    %v946 = vpack.c.b16 %v814, %v810
    %v947 = vpack.c.b16 %v815, %v811
    %v948 = vpack.c.b16 %v816, %v812
    %v949 = vpack.c.b16 %v821, %v817
    %v950 = vpack.c.b16 %v822, %v818
    %v951 = vpack.c.b16 %v823, %v819
    %v952 = vpack.c.b16 %v824, %v820
    %1081 = vmatprep.subr.bf16.mxu0 %v854
    %1082 = vmatpush1.bf16.msra.mxu0 %v853
    %1083 = vmatprep.subr.bf16.mxu0 %v850
    %1084 = vmatpush1.bf16.msra.mxu0 %v849
    %1085 = vmatprep.subr.bf16.mxu0 %v846
    %1086 = vmatpush1.bf16.msra.mxu0 %v845
    %1087 = vmatprep.subr.bf16.mxu0 %v842
    %1088 = vmatpush1.bf16.msra.mxu0 %v841
    %1089 = vmatprep.subr.bf16.mxu0 %v838
    %1090 = vmatpush1.bf16.msra.mxu0 %v837
    %1091 = vmatprep.subr.bf16.mxu0 %v834
    %1092 = vmatpush1.bf16.msra.mxu0 %v833
    %1093 = vmatprep.subr.bf16.mxu0 %v830
    %1094 = vmatpush1.bf16.msra.mxu0 %v829
    %1095 = vmatprep.subr.bf16.mxu0 %v826
    %1096 = vmatpush1.bf16.msra.mxu0 %v825
    %1097 = vmatprep.subr.bf16.mxu0 %v886
    %1098 = vmatpush2.bf16.msra.mxu0 %v885
    %1099 = vmatprep.subr.bf16.mxu0 %v882
    %1100 = vmatpush2.bf16.msra.mxu0 %v881
    %1101 = vmatprep.subr.bf16.mxu0 %v878
    %1102 = vmatpush2.bf16.msra.mxu0 %v877
    %1103 = vmatprep.subr.bf16.mxu0 %v874
    %1104 = vmatpush2.bf16.msra.mxu0 %v873
    %1105 = vmatprep.subr.bf16.mxu0 %v870
    %1106 = vmatpush2.bf16.msra.mxu0 %v869
    %1107 = vmatprep.subr.bf16.mxu0 %v866
    %1108 = vmatpush2.bf16.msra.mxu0 %v865
    %1109 = vmatprep.subr.bf16.mxu0 %v862
    %1110 = vmatpush2.bf16.msra.mxu0 %v861
    %1111 = vmatprep.subr.bf16.mxu0 %v858
    %1112 = vmatpush2.bf16.msra.mxu0 %v857
    %1113 = vmatprep.mubr.bf16.mxu0 %v288
    %1114 = vmatmul.mubr.bf16.gmra.mxu0 %v287
    %v1115 = vpop.f32.mrf.mxu0
    %v1116 = vadd.f32 %v424, %v1115
    %v1117 = vpop.f32.mrf.mxu0
    %v1118 = vadd.f32 %v428, %v1117
    %v1119 = vpop.f32.mrf.mxu0
    %v1120 = vpop.f32.mrf.mxu0
    %1121 = vdwg.mxu0
    %1122 = vmatprep.subr.bf16.mxu0 %v918
    %1123 = vmatpush1.bf16.msra.mxu0 %v917
    %1124 = vmatprep.subr.bf16.mxu0 %v914
    %1125 = vmatpush1.bf16.msra.mxu0 %v913
    %1126 = vmatprep.subr.bf16.mxu0 %v910
    %1127 = vmatpush1.bf16.msra.mxu0 %v909
    %1128 = vmatprep.subr.bf16.mxu0 %v906
    %1129 = vmatpush1.bf16.msra.mxu0 %v905
    %1130 = vmatprep.subr.bf16.mxu0 %v902
    %1131 = vmatpush1.bf16.msra.mxu0 %v901
    %1132 = vmatprep.subr.bf16.mxu0 %v898
    %1133 = vmatpush1.bf16.msra.mxu0 %v897
    %1134 = vmatprep.subr.bf16.mxu0 %v894
    %1135 = vmatpush1.bf16.msra.mxu0 %v893
    %1136 = vmatprep.subr.bf16.mxu0 %v890
    %1137 = vmatpush1.bf16.msra.mxu0 %v889
    %1138 = vmatprep.subr.bf16.mxu0 %v950
    %1139 = vmatpush2.bf16.msra.mxu0 %v949
    %1140 = vmatprep.subr.bf16.mxu0 %v946
    %1141 = vmatpush2.bf16.msra.mxu0 %v945
    %1142 = vmatprep.subr.bf16.mxu0 %v942
    %1143 = vmatpush2.bf16.msra.mxu0 %v941
    %1144 = vmatprep.subr.bf16.mxu0 %v938
    %1145 = vmatpush2.bf16.msra.mxu0 %v937
    %1146 = vmatprep.subr.bf16.mxu0 %v934
    %1147 = vmatpush2.bf16.msra.mxu0 %v933
    %1148 = vmatprep.subr.bf16.mxu0 %v930
    %1149 = vmatpush2.bf16.msra.mxu0 %v929
    %1150 = vmatprep.subr.bf16.mxu0 %v926
    %1151 = vmatpush2.bf16.msra.mxu0 %v925
    %1152 = vmatprep.subr.bf16.mxu0 %v922
    %1153 = vmatpush2.bf16.msra.mxu0 %v921
    %1154 = vmatprep.mubr.bf16.mxu0 %v290
    %1155 = vmatmul.mubr.bf16.gmra.mxu0 %v289
    %v1156 = vpop.f32.mrf.mxu0
    %v1157 = vadd.f32 %v1116, %v1156
    %v1158 = vpop.f32.mrf.mxu0
    %v1159 = vadd.f32 %v1118, %v1158
    %v1160 = vpop.f32.mrf.mxu0
    %v1161 = vpop.f32.mrf.mxu0
    %1162 = vdwg.mxu0
    %1163 = vmatprep.subr.bf16.mxu0 %v856
    %1164 = vmatpush1.bf16.msra.mxu0 %v855
    %1165 = vmatprep.subr.bf16.mxu0 %v852
    %1166 = vmatpush1.bf16.msra.mxu0 %v851
    %1167 = vmatprep.subr.bf16.mxu0 %v848
    %1168 = vmatpush1.bf16.msra.mxu0 %v847
    %1169 = vmatprep.subr.bf16.mxu0 %v844
    %1170 = vmatpush1.bf16.msra.mxu0 %v843
    %1171 = vmatprep.subr.bf16.mxu0 %v840
    %1172 = vmatpush1.bf16.msra.mxu0 %v839
    %1173 = vmatprep.subr.bf16.mxu0 %v836
    %1174 = vmatpush1.bf16.msra.mxu0 %v835
    %1175 = vmatprep.subr.bf16.mxu0 %v832
    %1176 = vmatpush1.bf16.msra.mxu0 %v831
    %1177 = vmatprep.subr.bf16.mxu0 %v828
    %1178 = vmatpush1.bf16.msra.mxu0 %v827
    %1179 = vmatprep.subr.bf16.mxu0 %v888
    %1180 = vmatpush2.bf16.msra.mxu0 %v887
    %1181 = vmatprep.subr.bf16.mxu0 %v884
    %1182 = vmatpush2.bf16.msra.mxu0 %v883
    %1183 = vmatprep.subr.bf16.mxu0 %v880
    %1184 = vmatpush2.bf16.msra.mxu0 %v879
    %1185 = vmatprep.subr.bf16.mxu0 %v876
    %1186 = vmatpush2.bf16.msra.mxu0 %v875
    %1187 = vmatprep.subr.bf16.mxu0 %v872
    %1188 = vmatpush2.bf16.msra.mxu0 %v871
    %1189 = vmatprep.subr.bf16.mxu0 %v868
    %1190 = vmatpush2.bf16.msra.mxu0 %v867
    %1191 = vmatprep.subr.bf16.mxu0 %v864
    %1192 = vmatpush2.bf16.msra.mxu0 %v863
    %1193 = vmatprep.subr.bf16.mxu0 %v860
    %1194 = vmatpush2.bf16.msra.mxu0 %v859
    %1195 = vmatprep.mubr.bf16.mxu0 %v288
    %1196 = vmatmul.mubr.bf16.gmra.mxu0 %v287
    %v1197 = vpop.f32.mrf.mxu0
    %v1198 = vadd.f32 %v432, %v1197
    %v1199 = vpop.f32.mrf.mxu0
    %v1200 = vadd.f32 %v436, %v1199
    %v1201 = vpop.f32.mrf.mxu0
    %v1202 = vpop.f32.mrf.mxu0
    %1203 = vdwg.mxu0
    %1204 = vmatprep.subr.bf16.mxu0 %v920
    %1205 = vmatpush1.bf16.msra.mxu0 %v919
    %1206 = vmatprep.subr.bf16.mxu0 %v916
    %1207 = vmatpush1.bf16.msra.mxu0 %v915
    %1208 = vmatprep.subr.bf16.mxu0 %v912
    %1209 = vmatpush1.bf16.msra.mxu0 %v911
    %1210 = vmatprep.subr.bf16.mxu0 %v908
    %1211 = vmatpush1.bf16.msra.mxu0 %v907
    %1212 = vmatprep.subr.bf16.mxu0 %v904
    %1213 = vmatpush1.bf16.msra.mxu0 %v903
    %1214 = vmatprep.subr.bf16.mxu0 %v900
    %1215 = vmatpush1.bf16.msra.mxu0 %v899
    %1216 = vmatprep.subr.bf16.mxu0 %v896
    %1217 = vmatpush1.bf16.msra.mxu0 %v895
    %1218 = vmatprep.subr.bf16.mxu0 %v892
    %1219 = vmatpush1.bf16.msra.mxu0 %v891
    %1220 = vmatprep.subr.bf16.mxu0 %v952
    %1221 = vmatpush2.bf16.msra.mxu0 %v951
    %1222 = vmatprep.subr.bf16.mxu0 %v948
    %1223 = vmatpush2.bf16.msra.mxu0 %v947
    %1224 = vmatprep.subr.bf16.mxu0 %v944
    %1225 = vmatpush2.bf16.msra.mxu0 %v943
    %1226 = vmatprep.subr.bf16.mxu0 %v940
    %1227 = vmatpush2.bf16.msra.mxu0 %v939
    %1228 = vmatprep.subr.bf16.mxu0 %v936
    %1229 = vmatpush2.bf16.msra.mxu0 %v935
    %1230 = vmatprep.subr.bf16.mxu0 %v932
    %1231 = vmatpush2.bf16.msra.mxu0 %v931
    %1232 = vmatprep.subr.bf16.mxu0 %v928
    %1233 = vmatpush2.bf16.msra.mxu0 %v927
    %1234 = vmatprep.subr.bf16.mxu0 %v924
    %1235 = vmatpush2.bf16.msra.mxu0 %v923
    %1236 = vmatprep.mubr.bf16.mxu0 %v290
    %1237 = vmatmul.mubr.bf16.gmra.mxu0 %v289
    %v1238 = vpop.f32.mrf.mxu0
    %v1239 = vadd.f32 %v1198, %v1238
    %v1240 = vpop.f32.mrf.mxu0
    %v1241 = vadd.f32 %v1200, %v1240
    %v1242 = vpop.f32.mrf.mxu0
    %v1243 = vpop.f32.mrf.mxu0
    %1244 = vdwg.mxu0
    %v1245 = vmin.f32 %v1157, 30.0
    %v1246 = vmin.f32 %v1159, 30.0
    %v1247 = vmin.f32 %v1239, 30.0
    %v1248 = vmin.f32 %v1241, 30.0
    %v1249 = vmul.f32 %v1245, 1.442695
    %v1250 = vpow.pop %v1249
    %v1251 = vmul.f32 %v1246, 1.442695
    %v1252 = vpow.pop %v1251
    %v1253 = vmul.f32 %v1247, 1.442695
    %v1254 = vpow.pop %v1253
    %v1255 = vmul.f32 %v1248, 1.442695
    %v1256 = vpow.pop %v1255
    %v1257 = vadd.f32 %v1250, 1.0
    %v1258 = vadd.f32 %v1252, 1.0
    %v1259 = vadd.f32 %v1254, 1.0
    %v1260 = vadd.f32 %v1256, 1.0
    %v1261 = vmul.f32 %v1257, %v1257
    %v1262 = vmul.f32 %v1258, %v1258
    %v1263 = vmul.f32 %v1259, %v1259
    %v1264 = vmul.f32 %v1260, %v1260
    %v1265 = vadd.f32 %v1261, 1.0
    %v1266 = vadd.f32 %v1262, 1.0
    %v1267 = vadd.f32 %v1263, 1.0
    %v1268 = vadd.f32 %v1264, 1.0
    %v1269 = vmul.f32 %v1157, 2.0
    %v1270 = vmul.f32 %v1159, 2.0
    %v1271 = vmul.f32 %v1239, 2.0
    %v1272 = vmul.f32 %v1241, 2.0
    %v1273 = vrcp.pop %v1265
    %v1274 = vrcp.pop %v1266
    %v1275 = vrcp.pop %v1267
    %v1276 = vrcp.pop %v1268
    %v1277 = vmul.f32 %v1269, %v1273
    %v1278 = vmul.f32 %v1270, %v1274
    %v1279 = vmul.f32 %v1271, %v1275
    %v1280 = vmul.f32 %v1272, %v1276
    %v1281 = vsub.f32 %v1157, %v1277
    %v1282 = vsub.f32 %v1159, %v1278
    %v1283 = vsub.f32 %v1239, %v1279
    %v1284 = vsub.f32 %v1241, %v1280
    %v1285 = vpack.c.bf16 %v1281, %v1281
    %v1286 = vpack.c.bf16 %v1282, %v1282
    %v1287 = vpack.c.bf16 %v1283, %v1283
    %v1288 = vpack.c.bf16 %v1284, %v1284
    %v1289 = vld [vmem:[#allocation10] sm:$0xf]
    %v1290 = vld [vmem:[#allocation10 + $0x4] sm:$0xf]
    %v1291 = vld [vmem:[#allocation10 + $0x8] sm:$0xf]
    %v1292 = vld [vmem:[#allocation10 + $0xc] sm:$0xf]
    %v1293 = vld [vmem:[#allocation10 + $0x10] sm:$0xf]
    %v1294 = vld [vmem:[#allocation10 + $0x14] sm:$0xf]
    %v1295 = vld [vmem:[#allocation10 + $0x18] sm:$0xf]
    %v1296 = vld [vmem:[#allocation10 + $0x1c] sm:$0xf]
    %v1297 = vld [vmem:[#allocation10 + $0x20] sm:$0xf]
    %v1298 = vld [vmem:[#allocation10 + $0x24] sm:$0xf]
    %v1299 = vld [vmem:[#allocation10 + $0x28] sm:$0xf]
    %v1300 = vld [vmem:[#allocation10 + $0x2c] sm:$0xf]
    %v1301 = vld [vmem:[#allocation10 + $0x30] sm:$0xf]
    %v1302 = vld [vmem:[#allocation10 + $0x34] sm:$0xf]
    %v1303 = vld [vmem:[#allocation10 + $0x38] sm:$0xf]
    %v1304 = vld [vmem:[#allocation10 + $0x3c] sm:$0xf]
    %v1305 = vld [vmem:[#allocation10 + $0x40] sm:$0xf]
    %v1306 = vld [vmem:[#allocation10 + $0x44] sm:$0xf]
    %v1307 = vld [vmem:[#allocation10 + $0x48] sm:$0xf]
    %v1308 = vld [vmem:[#allocation10 + $0x4c] sm:$0xf]
    %v1309 = vld [vmem:[#allocation10 + $0x50] sm:$0xf]
    %v1310 = vld [vmem:[#allocation10 + $0x54] sm:$0xf]
    %v1311 = vld [vmem:[#allocation10 + $0x58] sm:$0xf]
    %v1312 = vld [vmem:[#allocation10 + $0x5c] sm:$0xf]
    %v1313 = vld [vmem:[#allocation10 + $0x60] sm:$0xf]
    %v1314 = vld [vmem:[#allocation10 + $0x64] sm:$0xf]
    %v1315 = vld [vmem:[#allocation10 + $0x68] sm:$0xf]
    %v1316 = vld [vmem:[#allocation10 + $0x6c] sm:$0xf]
    %v1317 = vld [vmem:[#allocation10 + $0x70] sm:$0xf]
    %v1318 = vld [vmem:[#allocation10 + $0x74] sm:$0xf]
    %v1319 = vld [vmem:[#allocation10 + $0x78] sm:$0xf]
    %v1320 = vld [vmem:[#allocation10 + $0x7c] sm:$0xf]
    %v1321 = vld [vmem:[#allocation10 + $0x80] sm:$0xf]
    %v1322 = vld [vmem:[#allocation10 + $0x84] sm:$0xf]
    %v1323 = vld [vmem:[#allocation10 + $0x88] sm:$0xf]
    %v1324 = vld [vmem:[#allocation10 + $0x8c] sm:$0xf]
    %v1325 = vld [vmem:[#allocation10 + $0x90] sm:$0xf]
    %v1326 = vld [vmem:[#allocation10 + $0x94] sm:$0xf]
    %v1327 = vld [vmem:[#allocation10 + $0x98] sm:$0xf]
    %v1328 = vld [vmem:[#allocation10 + $0x9c] sm:$0xf]
    %v1329 = vld [vmem:[#allocation10 + $0xa0] sm:$0xf]
    %v1330 = vld [vmem:[#allocation10 + $0xa4] sm:$0xf]
    %v1331 = vld [vmem:[#allocation10 + $0xa8] sm:$0xf]
    %v1332 = vld [vmem:[#allocation10 + $0xac] sm:$0xf]
    %v1333 = vld [vmem:[#allocation10 + $0xb0] sm:$0xf]
    %v1334 = vld [vmem:[#allocation10 + $0xb4] sm:$0xf]
    %v1335 = vld [vmem:[#allocation10 + $0xb8] sm:$0xf]
    %v1336 = vld [vmem:[#allocation10 + $0xbc] sm:$0xf]
    %v1337 = vld [vmem:[#allocation10 + $0xc0] sm:$0xf]
    %v1338 = vld [vmem:[#allocation10 + $0xc4] sm:$0xf]
    %v1339 = vld [vmem:[#allocation10 + $0xc8] sm:$0xf]
    %v1340 = vld [vmem:[#allocation10 + $0xcc] sm:$0xf]
    %v1341 = vld [vmem:[#allocation10 + $0xd0] sm:$0xf]
    %v1342 = vld [vmem:[#allocation10 + $0xd4] sm:$0xf]
    %v1343 = vld [vmem:[#allocation10 + $0xd8] sm:$0xf]
    %v1344 = vld [vmem:[#allocation10 + $0xdc] sm:$0xf]
    %v1345 = vld [vmem:[#allocation10 + $0xe0] sm:$0xf]
    %v1346 = vld [vmem:[#allocation10 + $0xe4] sm:$0xf]
    %v1347 = vld [vmem:[#allocation10 + $0xe8] sm:$0xf]
    %v1348 = vld [vmem:[#allocation10 + $0xec] sm:$0xf]
    %v1349 = vld [vmem:[#allocation10 + $0xf0] sm:$0xf]
    %v1350 = vld [vmem:[#allocation10 + $0xf4] sm:$0xf]
    %v1351 = vld [vmem:[#allocation10 + $0xf8] sm:$0xf]
    %v1352 = vld [vmem:[#allocation10 + $0xfc] sm:$0xf]
    %v1417 = vunpack.c.l.b16 %v1289
    %v1418 = vunpack.c.l.b16 %v1290
    %v1419 = vunpack.c.l.b16 %v1291
    %v1420 = vunpack.c.l.b16 %v1292
    %v1421 = vunpack.c.l.b16 %v1293
    %v1422 = vunpack.c.l.b16 %v1294
    %v1423 = vunpack.c.l.b16 %v1295
    %v1424 = vunpack.c.l.b16 %v1296
    %v1425 = vunpack.c.l.b16 %v1297
    %v1426 = vunpack.c.l.b16 %v1298
    %v1427 = vunpack.c.l.b16 %v1299
    %v1428 = vunpack.c.l.b16 %v1300
    %v1429 = vunpack.c.l.b16 %v1301
    %v1430 = vunpack.c.l.b16 %v1302
    %v1431 = vunpack.c.l.b16 %v1303
    %v1432 = vunpack.c.l.b16 %v1304
    %v1433 = vunpack.c.l.b16 %v1305
    %v1434 = vunpack.c.l.b16 %v1306
    %v1435 = vunpack.c.l.b16 %v1307
    %v1436 = vunpack.c.l.b16 %v1308
    %v1437 = vunpack.c.l.b16 %v1309
    %v1438 = vunpack.c.l.b16 %v1310
    %v1439 = vunpack.c.l.b16 %v1311
    %v1440 = vunpack.c.l.b16 %v1312
    %v1441 = vunpack.c.l.b16 %v1313
    %v1442 = vunpack.c.l.b16 %v1314
    %v1443 = vunpack.c.l.b16 %v1315
    %v1444 = vunpack.c.l.b16 %v1316
    %v1445 = vunpack.c.l.b16 %v1317
    %v1446 = vunpack.c.l.b16 %v1318
    %v1447 = vunpack.c.l.b16 %v1319
    %v1448 = vunpack.c.l.b16 %v1320
    %v1449 = vunpack.c.l.b16 %v1321
    %v1450 = vunpack.c.l.b16 %v1322
    %v1451 = vunpack.c.l.b16 %v1323
    %v1452 = vunpack.c.l.b16 %v1324
    %v1453 = vunpack.c.l.b16 %v1325
    %v1454 = vunpack.c.l.b16 %v1326
    %v1455 = vunpack.c.l.b16 %v1327
    %v1456 = vunpack.c.l.b16 %v1328
    %v1457 = vunpack.c.l.b16 %v1329
    %v1458 = vunpack.c.l.b16 %v1330
    %v1459 = vunpack.c.l.b16 %v1331
    %v1460 = vunpack.c.l.b16 %v1332
    %v1461 = vunpack.c.l.b16 %v1333
    %v1462 = vunpack.c.l.b16 %v1334
    %v1463 = vunpack.c.l.b16 %v1335
    %v1464 = vunpack.c.l.b16 %v1336
    %v1465 = vunpack.c.l.b16 %v1337
    %v1466 = vunpack.c.l.b16 %v1338
    %v1467 = vunpack.c.l.b16 %v1339
    %v1468 = vunpack.c.l.b16 %v1340
    %v1469 = vunpack.c.l.b16 %v1341
    %v1470 = vunpack.c.l.b16 %v1342
    %v1471 = vunpack.c.l.b16 %v1343
    %v1472 = vunpack.c.l.b16 %v1344
    %v1473 = vunpack.c.l.b16 %v1345
    %v1474 = vunpack.c.l.b16 %v1346
    %v1475 = vunpack.c.l.b16 %v1347
    %v1476 = vunpack.c.l.b16 %v1348
    %v1477 = vunpack.c.l.b16 %v1349
    %v1478 = vunpack.c.l.b16 %v1350
    %v1479 = vunpack.c.l.b16 %v1351
    %v1480 = vunpack.c.l.b16 %v1352
    %v1481 = vpack.c.b16 %v1418, %v1417
    %v1482 = vpack.c.b16 %v1420, %v1419
    %v1483 = vpack.c.b16 %v1422, %v1421
    %v1484 = vpack.c.b16 %v1424, %v1423
    %v1485 = vpack.c.b16 %v1426, %v1425
    %v1486 = vpack.c.b16 %v1428, %v1427
    %v1487 = vpack.c.b16 %v1430, %v1429
    %v1488 = vpack.c.b16 %v1432, %v1431
    %v1489 = vpack.c.b16 %v1434, %v1433
    %v1490 = vpack.c.b16 %v1436, %v1435
    %v1491 = vpack.c.b16 %v1438, %v1437
    %v1492 = vpack.c.b16 %v1440, %v1439
    %v1493 = vpack.c.b16 %v1442, %v1441
    %v1494 = vpack.c.b16 %v1444, %v1443
    %v1495 = vpack.c.b16 %v1446, %v1445
    %v1496 = vpack.c.b16 %v1448, %v1447
    %v1497 = vpack.c.b16 %v1450, %v1449
    %v1498 = vpack.c.b16 %v1452, %v1451
    %v1499 = vpack.c.b16 %v1454, %v1453
    %v1500 = vpack.c.b16 %v1456, %v1455
    %v1501 = vpack.c.b16 %v1458, %v1457
    %v1502 = vpack.c.b16 %v1460, %v1459
    %v1503 = vpack.c.b16 %v1462, %v1461
    %v1504 = vpack.c.b16 %v1464, %v1463
    %v1505 = vpack.c.b16 %v1466, %v1465
    %v1506 = vpack.c.b16 %v1468, %v1467
    %v1507 = vpack.c.b16 %v1470, %v1469
    %v1508 = vpack.c.b16 %v1472, %v1471
    %v1509 = vpack.c.b16 %v1474, %v1473
    %v1510 = vpack.c.b16 %v1476, %v1475
    %v1511 = vpack.c.b16 %v1478, %v1477
    %v1512 = vpack.c.b16 %v1480, %v1479
    %1545 = vmatprep.subr.bf16.mxu0 0
    %1546 = vmatpush1.bf16.msra.mxu0 %v1488
    %1547 = vmatprep.subr.bf16.mxu0 0
    %1548 = vmatpush1.bf16.msra.mxu0 %v1487
    %1549 = vmatprep.subr.bf16.mxu0 0
    %1550 = vmatpush1.bf16.msra.mxu0 %v1486
    %1551 = vmatprep.subr.bf16.mxu0 0
    %1552 = vmatpush1.bf16.msra.mxu0 %v1485
    %1553 = vmatprep.subr.bf16.mxu0 0
    %1554 = vmatpush1.bf16.msra.mxu0 %v1484
    %1555 = vmatprep.subr.bf16.mxu0 0
    %1556 = vmatpush1.bf16.msra.mxu0 %v1483
    %1557 = vmatprep.subr.bf16.mxu0 0
    %1558 = vmatpush1.bf16.msra.mxu0 %v1482
    %1559 = vmatprep.subr.bf16.mxu0 0
    %1560 = vmatpush1.bf16.msra.mxu0 %v1481
    %1561 = vmatprep.subr.bf16.mxu0 0
    %1562 = vmatpush2.bf16.msra.mxu0 %v1496
    %1563 = vmatprep.subr.bf16.mxu0 0
    %1564 = vmatpush2.bf16.msra.mxu0 %v1495
    %1565 = vmatprep.subr.bf16.mxu0 0
    %1566 = vmatpush2.bf16.msra.mxu0 %v1494
    %1567 = vmatprep.subr.bf16.mxu0 0
    %1568 = vmatpush2.bf16.msra.mxu0 %v1493
    %1569 = vmatprep.subr.bf16.mxu0 0
    %1570 = vmatpush2.bf16.msra.mxu0 %v1492
    %1571 = vmatprep.subr.bf16.mxu0 0
    %1572 = vmatpush2.bf16.msra.mxu0 %v1491
    %1573 = vmatprep.subr.bf16.mxu0 0
    %1574 = vmatpush2.bf16.msra.mxu0 %v1490
    %1575 = vmatprep.subr.bf16.mxu0 0
    %1576 = vmatpush2.bf16.msra.mxu0 %v1489
    %1577 = vmatprep.mubr.bf16.mxu0 %v1286
    %1578 = vmatmul.mubr.bf16.gmra.mxu0 %v1285
    %v1579 = vpop.f32.mrf.mxu0
    %v1580 = vadd.f32 0.0, %v1579
    %v1581 = vpop.f32.mrf.mxu0
    %v1582 = vpop.f32.mrf.mxu0
    %v1583 = vpop.f32.mrf.mxu0
    %1584 = vdwg.mxu0
    %1585 = vmatprep.subr.bf16.mxu0 0
    %1586 = vmatpush1.bf16.msra.mxu0 %v1504
    %1587 = vmatprep.subr.bf16.mxu0 0
    %1588 = vmatpush1.bf16.msra.mxu0 %v1503
    %1589 = vmatprep.subr.bf16.mxu0 0
    %1590 = vmatpush1.bf16.msra.mxu0 %v1502
    %1591 = vmatprep.subr.bf16.mxu0 0
    %1592 = vmatpush1.bf16.msra.mxu0 %v1501
    %1593 = vmatprep.subr.bf16.mxu0 0
    %1594 = vmatpush1.bf16.msra.mxu0 %v1500
    %1595 = vmatprep.subr.bf16.mxu0 0
    %1596 = vmatpush1.bf16.msra.mxu0 %v1499
    %1597 = vmatprep.subr.bf16.mxu0 0
    %1598 = vmatpush1.bf16.msra.mxu0 %v1498
    %1599 = vmatprep.subr.bf16.mxu0 0
    %1600 = vmatpush1.bf16.msra.mxu0 %v1497
    %1601 = vmatprep.subr.bf16.mxu0 0
    %1602 = vmatpush2.bf16.msra.mxu0 %v1512
    %1603 = vmatprep.subr.bf16.mxu0 0
    %1604 = vmatpush2.bf16.msra.mxu0 %v1511
    %1605 = vmatprep.subr.bf16.mxu0 0
    %1606 = vmatpush2.bf16.msra.mxu0 %v1510
    %1607 = vmatprep.subr.bf16.mxu0 0
    %1608 = vmatpush2.bf16.msra.mxu0 %v1509
    %1609 = vmatprep.subr.bf16.mxu0 0
    %1610 = vmatpush2.bf16.msra.mxu0 %v1508
    %1611 = vmatprep.subr.bf16.mxu0 0
    %1612 = vmatpush2.bf16.msra.mxu0 %v1507
    %1613 = vmatprep.subr.bf16.mxu0 0
    %1614 = vmatpush2.bf16.msra.mxu0 %v1506
    %1615 = vmatprep.subr.bf16.mxu0 0
    %1616 = vmatpush2.bf16.msra.mxu0 %v1505
    %1617 = vmatprep.mubr.bf16.mxu0 %v1288
    %1618 = vmatmul.mubr.bf16.gmra.mxu0 %v1287
    %v1619 = vpop.f32.mrf.mxu0
    %v1620 = vadd.f32 %v1580, %v1619
    %v1621 = vpop.f32.mrf.mxu0
    %v1622 = vpop.f32.mrf.mxu0
    %v1623 = vpop.f32.mrf.mxu0
    %1624 = vdwg.mxu0
    %v1625 = vpack.c.bf16 %v1620, %v1620
    %1626 = vst [vmem:[#allocation11] sm:$0xf] %v1625
    // Predicated region
    $region46: #{tpu_custom_call.1} parent=1 // pred_check
      _
    $region47: #{tpu_custom_call.1} parent=1 // pred_check_branch
      %1628 = sbr.rel (0) target = $region49
    $region48: #{tpu_custom_call.1} parent=1 // pred_region
      %s1630 = ssub.s32 64, 64
      %1631 = vsyncadd [#allocation4], %s1630
      %s1633 = sshll.u32 [#allocation11], 4
      %s1634 = int_to_ptr.vmem [resolvable:$true] %s1633
      %1636 = dma.vmem_to_hbm [thread:$0]  %s1634, 64, %s6, [#allocation4]
    $region49: #{tpu_custom_call.1} parent=1 // pred_fallthru
      _
    // Predicated region
    $region50: #{tpu_custom_call.1} parent=1 // pred_check
      _
    $region51: #{tpu_custom_call.1} parent=1 // pred_check_branch
      %1638 = sbr.rel (0) target = $region53
    $region52: #{tpu_custom_call.1} parent=1 // pred_region
      %1639 = dma.done [#allocation4], 64
    $region53: #{tpu_custom_call.1} parent=1 // pred_fallthru
      _
    %1640 = vsyncpa [#allocation3], 1
    %1641 = vsyncpa [#allocation6], 1
    %1642 = vsyncpa [#allocation9], 1
    %1643 = vsyncpa [#allocation4], 1

</llo_original>
